<compile_context>
chip_gen: v5e
topology: v5e:2x2
jax: 0.10.0
libtpu: 0.0.40
codegen_flags: <defaults>
</compile_context>

<pallas_src>
import jax
import jax.numpy as jnp
from jax.experimental import pallas as pl
from jax.experimental.pallas import tpu as pltpu


def _round_up(v, m):
    return ((v + m - 1) // m) * m


def _ncm_kernel(x_ref, mT_ref, xn_ref, mn_ref, o_ref, acc_ref):
    # x_ref : (tb, tk)  batch x feature tile
    # mT_ref: (tk, tc)  transposed-means tile
    # xn_ref: (tb, 1)   ||x||^2 per row
    # mn_ref: (1, tc)   ||m||^2 per class
    # o_ref : (tb, tc)  -squared-distance tile
    # acc_ref: VMEM (tb, tc) f32 accumulator (resident across the k axis)
    k = pl.program_id(2)

    @pl.when(k == 0)
    def _init():
        acc_ref[...] = jnp.zeros_like(acc_ref)

    # MXU matmul, f32 accumulation.
    acc_ref[...] += jnp.dot(
        x_ref[...], mT_ref[...], preferred_element_type=jnp.float32
    )

    @pl.when(k == pl.num_programs(2) - 1)
    def _finalize():
        # Single fused epilogue pass + one lane-dense store.
        o_ref[...] = (
            2.0 * acc_ref[...] - xn_ref[...] - mn_ref[...]
        ).astype(o_ref.dtype)


def deep_ncm_forward(x, means, *, batch_tile=512, class_tile=128,
                     feature_tile=512):
    """Pallas implementation of DeepNCM.forward.

    x:     (B, F) float32 feature vectors
    means: (C, F) float32 class means
    returns (B, C) float32 negative squared Euclidean distances
    """
    x = jnp.asarray(x, jnp.float32)
    means = jnp.asarray(means, jnp.float32)
    B, F = x.shape
    C, F2 = means.shape
    assert F == F2, "feature dims must match"

    if C == 0:
        # Module starts with zero classes; nothing to compute.
        return jnp.zeros((B, 0), jnp.float32)

    # Tile sizes: sublane-aligned batch tile, lane-dense (multiple-of-128)
    # class and feature tiles, clamped to the (padded) problem size.
    tb = min(_round_up(batch_tile, 8), _round_up(B, 8))
    tc = min(_round_up(class_tile, 128), _round_up(C, 128))
    tk = min(_round_up(feature_tile, 128), _round_up(F, 128))

    B_pad = _round_up(B, tb)
    C_pad = _round_up(C, tc)
    F_pad = _round_up(F, tk)

    # Zero padding is benign: padded features contribute 0 to every distance,
    # padded batch rows / classes are sliced off at the end.
    x_p = jnp.zeros((B_pad, F_pad), jnp.float32).at[:B, :F].set(x)
    m_p = jnp.zeros((C_pad, F_pad), jnp.float32).at[:C, :F].set(means)

    mT = m_p.T                                              # (F_pad, C_pad)
    x_norm = jnp.sum(x_p * x_p, axis=1, keepdims=True)      # (B_pad, 1)
    m_norm = jnp.sum(m_p * m_p, axis=1)[None, :]            # (1, C_pad)

    nb = B_pad // tb
    nc = C_pad // tc
    nk = F_pad // tk

    cost = pl.CostEstimate(
        flops=2 * B_pad * C_pad * F_pad + 3 * B_pad * C_pad,
        transcendentals=0,
        bytes_accessed=4 * (B_pad * F_pad * nc + F_pad * C_pad * nb
                            + B_pad * C_pad + B_pad + C_pad),
    )

    out = pl.pallas_call(
        _ncm_kernel,
        out_shape=jax.ShapeDtypeStruct((B_pad, C_pad), jnp.float32),
        grid=(nb, nc, nk),
        in_specs=[
            pl.BlockSpec((tb, tk), lambda i, j, k: (i, k)),   # x tile
            pl.BlockSpec((tk, tc), lambda i, j, k: (k, j)),   # means^T tile
            pl.BlockSpec((tb, 1), lambda i, j, k: (i, 0)),    # ||x||^2
            pl.BlockSpec((1, tc), lambda i, j, k: (0, j)),    # ||m||^2
        ],
        out_specs=pl.BlockSpec((tb, tc), lambda i, j, k: (i, j)),
        scratch_shapes=[pltpu.VMEM((tb, tc), jnp.float32)],
        compiler_params=pltpu.CompilerParams(
            dimension_semantics=("parallel", "parallel", "arbitrary"),
        ),
        cost_estimate=cost,
    )(x_p, mT, x_norm, m_norm)

    return out[:B, :C]


def deep_ncm_forward_ref(x, means):
    diff = x[:, None, :] - means[None, :, :]
    return -jnp.sum(diff * diff, axis=-1)


if __name__ == "__main__":
    # Small shapes consistent with the module: features=128, classes=8, batch=8.
    features = 128
    classes = 8
    batch = 8

    key = jax.random.PRNGKey(0)
    kx, km = jax.random.split(key)
    x = jax.random.normal(kx, (batch, features), dtype=jnp.float32)
    # The module initializes means to zeros; use deterministic random means here
    # so the distance computation is non-trivial.
    means = jax.random.normal(km, (classes, features), dtype=jnp.float32)

    out = deep_ncm_forward(x, means)
    out = jax.block_until_ready(out)

    ref = deep_ncm_forward_ref(x, means)
    assert out.shape == (batch, classes)
    # Matmul-identity form can lose a little precision vs direct differences
    # (cancellation when x is near a mean); f32 accumulation keeps it tight.
    assert jnp.allclose(out, ref, rtol=1e-4, atol=1e-2), "mismatch vs reference"

    # TODO(synk): update_means / update_means_decay / add_class are host-side
    # stateful bookkeeping (python dict of labels, dynamic class growth) and
    # are not part of forward; not implemented as kernels.
    print("KERNEL_OK")
</pallas_src>

<mosaic_0001>
module attributes {stable_mosaic.version = 11 : i64} {
  func.func @_ncm_kernel(%arg0: i32, %arg1: i32, %arg2: i32, %arg3: memref<8x128xf32, #tpu.memory_space<vmem>>, %arg4: memref<128x128xf32, #tpu.memory_space<vmem>>, %arg5: memref<8x1xf32, #tpu.memory_space<vmem>>, %arg6: memref<1x128xf32, #tpu.memory_space<vmem>>, %arg7: memref<8x128xf32, #tpu.memory_space<vmem>>, %arg8: memref<8x128xf32, #tpu.memory_space<vmem>>) attributes {dimension_semantics = [#tpu.dimension_semantics<parallel>, #tpu.dimension_semantics<parallel>, #tpu.dimension_semantics<arbitrary>], iteration_bounds = array<i64: 1, 1, 1>, scalar_prefetch = 0 : i64, scratch_operands = 1 : i64, tpu.core_type = #tpu.core_type<tc>, window_params = [{transform_indices = @transform_0, window_bounds = array<i64: 8, 128>}, {transform_indices = @transform_1, window_bounds = array<i64: 128, 128>}, {transform_indices = @transform_2, window_bounds = array<i64: 8, 1>}, {transform_indices = @transform_3, window_bounds = array<i64: 1, 128>}, {transform_indices = @transform_4, window_bounds = array<i64: 8, 128>}]} {
    %c0_i32 = arith.constant 0 : i32
    %0 = arith.cmpi eq, %arg2, %c0_i32 : i32
    %1 = arith.extui %0 : i1 to i32
    %c0_i32_0 = arith.constant 0 : i32
    %2 = arith.cmpi ne, %1, %c0_i32_0 : i32
    scf.if %2 {
      %cst_10 = arith.constant 0.000000e+00 : f32
      %12 = vector.broadcast %cst_10 : f32 to vector<8x128xf32>
      %c0_11 = arith.constant 0 : index
      %c0_12 = arith.constant 0 : index
      %13 = vector.load %arg8[%c0_11, %c0_12] : memref<8x128xf32, #tpu.memory_space<vmem>>, vector<8x128xf32>
      tpu.vector_store %arg8[%c0_11, %c0_12], %12 {strides = array<i32>} : memref<8x128xf32, #tpu.memory_space<vmem>>, vector<8x128xf32>,
    } else {
    }
    %c0 = arith.constant 0 : index
    %c0_1 = arith.constant 0 : index
    %3 = vector.load %arg8[%c0, %c0_1] : memref<8x128xf32, #tpu.memory_space<vmem>>, vector<8x128xf32>
    %c0_2 = arith.constant 0 : index
    %c0_3 = arith.constant 0 : index
    %4 = vector.load %arg3[%c0_2, %c0_3] : memref<8x128xf32, #tpu.memory_space<vmem>>, vector<8x128xf32>
    %c0_4 = arith.constant 0 : index
    %c0_5 = arith.constant 0 : index
    %5 = vector.load %arg4[%c0_4, %c0_5] : memref<128x128xf32, #tpu.memory_space<vmem>>, vector<128x128xf32>
    %cst = arith.constant dense<0.000000e+00> : vector<8x128xf32>
    %6 = tpu.matmul %4, %5, %cst {dimension_numbers = #tpu.dot_dimension_numbers<[1], [0], [0], [1], [0, 0, 1, 1], [], []>} : vector<8x128xf32>, vector<128x128xf32>, vector<8x128xf32> -> vector<8x128xf32>
    %7 = arith.addf %3, %6 : vector<8x128xf32>
    %c0_6 = arith.constant 0 : index
    %c0_7 = arith.constant 0 : index
    %8 = vector.load %arg8[%c0_6, %c0_7] : memref<8x128xf32, #tpu.memory_space<vmem>>, vector<8x128xf32>
    tpu.vector_store %arg8[%c0_6, %c0_7], %7 {strides = array<i32>} : memref<8x128xf32, #tpu.memory_space<vmem>>, vector<8x128xf32>,
    %c0_i32_8 = arith.constant 0 : i32
    %9 = arith.cmpi eq, %arg2, %c0_i32_8 : i32
    %10 = arith.extui %9 : i1 to i32
    %c0_i32_9 = arith.constant 0 : i32
    %11 = arith.cmpi ne, %10, %c0_i32_9 : i32
    scf.if %11 {
      %c0_10 = arith.constant 0 : index
      %c0_11 = arith.constant 0 : index
      %12 = vector.load %arg8[%c0_10, %c0_11] : memref<8x128xf32, #tpu.memory_space<vmem>>, vector<8x128xf32>
      %cst_12 = arith.constant 2.000000e+00 : f32
      %13 = vector.broadcast %cst_12 : f32 to vector<8x128xf32>
      %14 = arith.mulf %13, %12 : vector<8x128xf32>
      %c0_13 = arith.constant 0 : index
      %c0_14 = arith.constant 0 : index
      %15 = vector.load %arg5[%c0_13, %c0_14] : memref<8x1xf32, #tpu.memory_space<vmem>>, vector<8x1xf32>
      %16 = vector.broadcast %15 : vector<8x1xf32> to vector<8x128xf32>
      %17 = arith.subf %14, %16 : vector<8x128xf32>
      %c0_15 = arith.constant 0 : index
      %c0_16 = arith.constant 0 : index
      %18 = vector.load %arg6[%c0_15, %c0_16] : memref<1x128xf32, #tpu.memory_space<vmem>>, vector<1x128xf32>
      %19 = vector.broadcast %18 : vector<1x128xf32> to vector<8x128xf32>
      %20 = arith.subf %17, %19 : vector<8x128xf32>
      %c0_17 = arith.constant 0 : index
      %c0_18 = arith.constant 0 : index
      %21 = vector.load %arg7[%c0_17, %c0_18] : memref<8x128xf32, #tpu.memory_space<vmem>>, vector<8x128xf32>
      tpu.vector_store %arg7[%c0_17, %c0_18], %20 {strides = array<i32>} : memref<8x128xf32, #tpu.memory_space<vmem>>, vector<8x128xf32>,
    } else {
    }
    return
  }
  func.func @transform_0(%arg0: i32, %arg1: i32, %arg2: i32) -> (i32, i32) {
    %c0_i32 = arith.constant 0 : i32
    return %arg0, %arg2 : i32, i32
  }
  func.func @transform_1(%arg0: i32, %arg1: i32, %arg2: i32) -> (i32, i32) {
    %c0_i32 = arith.constant 0 : i32
    return %arg2, %arg1 : i32, i32
  }
  func.func @transform_2(%arg0: i32, %arg1: i32, %arg2: i32) -> (i32, i32) {
    %c0_i32 = arith.constant 0 : i32
    %c0_i32_0 = arith.constant 0 : i32
    return %arg0, %c0_i32 : i32, i32
  }
  func.func @transform_3(%arg0: i32, %arg1: i32, %arg2: i32) -> (i32, i32) {
    %c0_i32 = arith.constant 0 : i32
    %c0_i32_0 = arith.constant 0 : i32
    return %c0_i32, %arg1 : i32, i32
  }
  func.func @transform_4(%arg0: i32, %arg1: i32, %arg2: i32) -> (i32, i32) {
    %c0_i32 = arith.constant 0 : i32
    return %arg0, %arg1 : i32, i32
  }
}

</mosaic_0001>

<llo_original>
// kernel: tpu_custom_call.1
$region0: #{tpu_custom_call.1}
  #allocation0 [shape = 'u32[]', space=smem, size = 0x4, offset = 0x4, fixed_abs, tag = 'smem constant byte address 0x4 - core index']
  #allocation1 [shape = 'u32[72,128]{1,0:T(1,128)}', space=vmem, size = 0x9000, scoped, tag = 'internal scratch']
  #allocation2 [shape = 'f32[8,128]{1,0:T(8,128)}', space=vmem, size = 0x1000, scoped, tag = 'scratch operand']
  %s0 = inlined_call_operand.vmem [shape: f32[8,128], index: 0, kind: input, shape index: {}]
  %s1 = inlined_call_operand.hbm [shape: f32[128,128], index: 1, kind: input, shape index: {}]
  %s2 = inlined_call_operand.vmem [shape: f32[8,1], index: 2, kind: input, shape index: {}]
  %s3 = inlined_call_operand.vmem [shape: f32[1,128], index: 3, kind: input, shape index: {}]
  %s4 = inlined_call_operand.hbm [shape: f32[8,128], index: 4, kind: output, shape index: {}]
  %s5 = sld [smem:[#allocation0]]
  $region38: #{tpu_custom_call.1} parent=0
    _
  %s7 = ssub.s32 1, %s5
  %s8 = scalar_select 0, %s7, %s5
  $region1: #{tpu_custom_call.1} parent=0
    #allocation3 [shape = 'u8[65536]{0}', space=vmem, size = 0x10000, scoped, tag = 'input window, operand 1, single buffered']
    #allocation4 [shape = 's32[1]{0}', space=sflag, size = 0x4, scoped, tag = 'scoped memory for tpu_custom_call.1']
    #allocation5 [shape = 's32[1]{0}', space=sflag, size = 0x4, scoped, tag = 'scoped memory for tpu_custom_call.1']
    #allocation6 [shape = 'u8[4096]{0}', space=vmem, size = 0x1000, scoped, tag = 'output window, operand 0, single buffered']
    %9 = vsyncpa [#allocation4], 0
    %10 = vsyncpa [#allocation5], 0
    // Predicated region
    $region2: #{tpu_custom_call.1} parent=1 // pred_check
      _
    $region3: #{tpu_custom_call.1} parent=1 // pred_check_branch
      %12 = sbr.rel (0) target = $region5
    $region4: #{tpu_custom_call.1} parent=1 // pred_region
      _
    $region5: #{tpu_custom_call.1} parent=1 // pred_fallthru
      _
    // Predicated region
    $region6: #{tpu_custom_call.1} parent=1 // pred_check
      _
    $region7: #{tpu_custom_call.1} parent=1 // pred_check_branch
      %14 = sbr.rel (0) target = $region9
    $region8: #{tpu_custom_call.1} parent=1 // pred_region
      %16 = vsyncadd [#allocation4], 0
      %s17 = sshll.u32 %s1, 4
      %s18 = int_to_ptr.hbm [resolvable:$true] %s17
      %s19 = sshll.u32 [#allocation3], 4
      %s20 = int_to_ptr.vmem [resolvable:$true] %s19
      %25 = dma.hbm_to_vmem [thread:$0]  %s18, 2048, %s20, [#allocation4], 128, 128, 8
    $region9: #{tpu_custom_call.1} parent=1 // pred_fallthru
      _
    // Predicated region
    $region10: #{tpu_custom_call.1} parent=1 // pred_check
      _
    $region11: #{tpu_custom_call.1} parent=1 // pred_check_branch
      %27 = sbr.rel (0) target = $region13
    $region12: #{tpu_custom_call.1} parent=1 // pred_region
      _
    $region13: #{tpu_custom_call.1} parent=1 // pred_fallthru
      _
    // Predicated region
    $region14: #{tpu_custom_call.1} parent=1 // pred_check
      _
    $region15: #{tpu_custom_call.1} parent=1 // pred_check_branch
      %29 = sbr.rel (0) target = $region17
    $region16: #{tpu_custom_call.1} parent=1 // pred_region
      _
    $region17: #{tpu_custom_call.1} parent=1 // pred_fallthru
      _
    // Predicated region
    $region18: #{tpu_custom_call.1} parent=1 // pred_check
      _
    $region19: #{tpu_custom_call.1} parent=1 // pred_check_branch
      %31 = sbr.rel (0) target = $region21
    $region20: #{tpu_custom_call.1} parent=1 // pred_region
      %33 = dma.done [#allocation4], 2048
    $region21: #{tpu_custom_call.1} parent=1 // pred_fallthru
      _
    %p34 = scmp.eq.s32.totalorder 0, 0
    // Predicated region
    $region22: #{tpu_custom_call.1} parent=1 // pred_check
      %p35 = pneg %p34
    $region23: #{tpu_custom_call.1} parent=1 // pred_check_branch
      %37 = sbr.rel (%p35) target = $region25
    $region24: #{tpu_custom_call.1} parent=1 // pred_region
      %38 = vst [vmem:[#allocation2] sm:$0xff] 0.0
    $region25: #{tpu_custom_call.1} parent=1 // pred_fallthru
      _
    %v39 = vld [vmem:[#allocation2] sm:$0xff]
    %v40 = vld [vmem:[%s0] sm:$0xff]
    %v41 = vld [vmem:[#allocation3] sm:$0xff]
    %v42 = vld [vmem:[#allocation3 + $0x8] sm:$0xff]
    %v43 = vld [vmem:[#allocation3 + $0x10] sm:$0xff]
    %v44 = vld [vmem:[#allocation3 + $0x18] sm:$0xff]
    %v45 = vld [vmem:[#allocation3 + $0x20] sm:$0xff]
    %v46 = vld [vmem:[#allocation3 + $0x28] sm:$0xff]
    %v47 = vld [vmem:[#allocation3 + $0x30] sm:$0xff]
    %v48 = vld [vmem:[#allocation3 + $0x38] sm:$0xff]
    %v49 = vld [vmem:[#allocation3 + $0x40] sm:$0xff]
    %v50 = vld [vmem:[#allocation3 + $0x48] sm:$0xff]
    %v51 = vld [vmem:[#allocation3 + $0x50] sm:$0xff]
    %v52 = vld [vmem:[#allocation3 + $0x58] sm:$0xff]
    %v53 = vld [vmem:[#allocation3 + $0x60] sm:$0xff]
    %v54 = vld [vmem:[#allocation3 + $0x68] sm:$0xff]
    %v55 = vld [vmem:[#allocation3 + $0x70] sm:$0xff]
    %v56 = vld [vmem:[#allocation3 + $0x78] sm:$0xff]
    %57 = vmatpush.msra.mxu0 %v56
    %58 = vmatpush.msra.mxu0 %v55
    %59 = vmatpush.msra.mxu0 %v54
    %60 = vmatpush.msra.mxu0 %v53
    %61 = vmatpush.msra.mxu0 %v52
    %62 = vmatpush.msra.mxu0 %v51
    %63 = vmatpush.msra.mxu0 %v50
    %64 = vmatpush.msra.mxu0 %v49
    %65 = vmatpush.msra.mxu0 %v48
    %66 = vmatpush.msra.mxu0 %v47
    %67 = vmatpush.msra.mxu0 %v46
    %68 = vmatpush.msra.mxu0 %v45
    %69 = vmatpush.msra.mxu0 %v44
    %70 = vmatpush.msra.mxu0 %v43
    %71 = vmatpush.msra.mxu0 %v42
    %72 = vmatpush.msra.mxu0 %v41
    %73 = vmatmul.f32.gmra.mxu0 %v40
    %v74 = vpop.f32.mrf.mxu0
    %v75 = vadd.f32 0.0, %v74
    %76 = vdwg.mxu0
    %v77 = vadd.f32 %v39, %v75
    %78 = vst [vmem:[#allocation2] sm:$0xff] %v77
    // Predicated region
    $region26: #{tpu_custom_call.1} parent=1 // pred_check
      %p79 = pneg %p34
    $region27: #{tpu_custom_call.1} parent=1 // pred_check_branch
      %81 = sbr.rel (%p79) target = $region29
    $region28: #{tpu_custom_call.1} parent=1 // pred_region
      %v82 = vld [vmem:[#allocation2] sm:$0xff]
      %v83 = vmul.f32 %v82, 2.0
      %v84 = vld [vmem:[%s2] sm:$0xff]
      %86 = vset.pattern.permute.xlu0 0
      %87 = vperm.xlu0 %86, %v84
      %v88 = vpop.permute.xlu0 %87
      %v90 = vsub.f32 %v83, %v88
      %v91 = vld [vmem:[%s3] sm:$0x1]
      %v93 = vperm.slane %v91, 0
      %v95 = vsub.f32 %v90, %v93
      %96 = vst [vmem:[#allocation6] sm:$0xff] %v95
    $region29: #{tpu_custom_call.1} parent=1 // pred_fallthru
      _
    // Predicated region
    $region30: #{tpu_custom_call.1} parent=1 // pred_check
      _
    $region31: #{tpu_custom_call.1} parent=1 // pred_check_branch
      %98 = sbr.rel (0) target = $region33
    $region32: #{tpu_custom_call.1} parent=1 // pred_region
      %100 = vsyncadd [#allocation5], 0
      %s102 = sshll.u32 [#allocation6], 4
      %s103 = int_to_ptr.vmem [resolvable:$true] %s102
      %s104 = sshll.u32 %s4, 4
      %s105 = int_to_ptr.hbm [resolvable:$true] %s104
      %107 = dma.vmem_to_hbm [thread:$0]  %s103, 128, %s105, [#allocation5]
    $region33: #{tpu_custom_call.1} parent=1 // pred_fallthru
      _
    // Predicated region
    $region34: #{tpu_custom_call.1} parent=1 // pred_check
      _
    $region35: #{tpu_custom_call.1} parent=1 // pred_check_branch
      %109 = sbr.rel (0) target = $region37
    $region36: #{tpu_custom_call.1} parent=1 // pred_region
      %111 = dma.done [#allocation5], 128
    $region37: #{tpu_custom_call.1} parent=1 // pred_fallthru
      _
    %112 = vsyncpa [#allocation4], 1
    %113 = vsyncpa [#allocation5], 1

</llo_original>
